<compile_context>
chip_gen: v6e
topology: v6e:2x2x1
jax: 0.10.0
libtpu: 0.0.40
codegen_flags: <defaults>
</compile_context>

<pallas_src>
import functools

import jax
import jax.numpy as jnp
from jax.experimental import pallas as pl
from jax.experimental.pallas import tpu as pltpu

LN_EPS = 1e-5
LANE = 128
SUBLANE = 8


def _cdiv(a, b):
    return -(-a // b)


def _round_up(n, m):
    return _cdiv(n, m) * m


def _pad2(a, rows, cols):
    r, c = a.shape
    return jnp.pad(a, ((0, rows - r), (0, cols - c)))  # zero padding


# ---------------------------------------------------------------------------
# Kernel
# ---------------------------------------------------------------------------
def ddpg_actor_kernel(
    x_ref,        # [tb, n_obs]     f32
    w1_ref,       # [n_obs, d1_p]   matmul dtype (bf16)
    p1_ref,       # [3, d1_p]       f32  (bias ; gamma ; beta of layer 1)
    w2_ref,       # [d1_p, d2_p]    matmul dtype
    p2_ref,       # [3, d2_p]       f32
    wv_ref,       # [d2_p, n_act_p] matmul dtype
    bv_ref,       # [1, n_act_p]    f32
    out_ref,      # [tb, n_act_p]
    *, d1, d2,
):
    mm_dtype = w1_ref.dtype

    # Hoist small parameter reads once (kept as sublane-broadcast adds/muls).
    b1, g1, be1 = p1_ref[0:1, :], p1_ref[1:2, :], p1_ref[2:3, :]
    b2, g2, be2 = p2_ref[0:1, :], p2_ref[1:2, :], p2_ref[2:3, :]
    bv = bv_ref[...]

    def layer_norm(h, g, b, true_dim):
        # Padded lanes of h are exactly 0 (zero-padded W / bias), so full-lane
        # sums equal the true-width sums; var = E[h^2] - mu^2, no lane mask.
        inv_d = jnp.float32(1.0 / true_dim)
        mu = jnp.sum(h, axis=-1, keepdims=True) * inv_d
        ex2 = jnp.sum(h * h, axis=-1, keepdims=True) * inv_d
        var = ex2 - mu * mu
        # gamma/beta are zero in padded lanes -> padded lanes stay exactly 0.
        return (h - mu) * jax.lax.rsqrt(var + LN_EPS) * g + b

    x = x_ref[...].astype(mm_dtype)

    # hidden layer 1: Linear -> LayerNorm -> ReLU
    h = jnp.dot(x, w1_ref[...], preferred_element_type=jnp.float32) + b1
    h = jnp.maximum(layer_norm(h, g1, be1, d1), 0.0)

    # hidden layer 2: Linear -> LayerNorm -> ReLU
    h = jnp.dot(h.astype(mm_dtype), w2_ref[...],
                preferred_element_type=jnp.float32) + b2
    h = jnp.maximum(layer_norm(h, g2, be2, d2), 0.0)

    # output layer: Linear -> tanh (output_activation='tanh')
    o = jnp.dot(h.astype(mm_dtype), wv_ref[...],
                preferred_element_type=jnp.float32) + bv
    out_ref[...] = jnp.tanh(o).astype(out_ref.dtype)


# ---------------------------------------------------------------------------
# One-time parameter preparation (pad + cast + pack).  Cache the result.
# ---------------------------------------------------------------------------
def prepare_params(params, *, n_obs, fc_dims, n_act, matmul_dtype=jnp.bfloat16):
    assert len(fc_dims) == 2, "this script fixes fc_dims to two hidden layers"
    d1, d2 = fc_dims
    d1_p = _round_up(d1, LANE)
    d2_p = _round_up(d2, LANE)
    n_act_p = _round_up(n_act, LANE)

    def pack3(b, g, be, cols):
        return jnp.concatenate(
            [_pad2(b, 1, cols), _pad2(g, 1, cols), _pad2(be, 1, cols)], axis=0)

    return {
        # Matmul operands in matmul_dtype; K of layer 1 stays unpadded.
        "w1": _pad2(params["w1"], n_obs, d1_p).astype(matmul_dtype),
        "w2": _pad2(params["w2"], d1_p, d2_p).astype(matmul_dtype),
        "wv": _pad2(params["wv"], d2_p, n_act_p).astype(matmul_dtype),
        # Small per-layer params stay f32, packed as [bias ; gamma ; beta].
        "p1": pack3(params["b1"], params["g1"], params["be1"], d1_p),
        "p2": pack3(params["b2"], params["g2"], params["be2"], d2_p),
        "bv": _pad2(params["bv"], 1, n_act_p),
        "dims": (n_obs, d1, d2, n_act, d1_p, d2_p, n_act_p),
    }


def _vmem_limit_bytes(param_args, tb, n_obs, n_act_p, d1_p, d2_p, out_itemsize):
    param_bytes = sum(int(a.size) * a.dtype.itemsize for a in param_args)
    stream_bytes = 2 * tb * (n_obs * 4 + n_act_p * out_itemsize)   # x/out double buffers
    interm_bytes = 4 * tb * (d1_p + d2_p) * 4                      # live f32 intermediates (generous)
    need = param_bytes + stream_bytes + interm_bytes
    try:
        cap = int(pltpu.get_tpu_info().vmem_capacity_bytes)
    except Exception:
        cap = 64 << 20      # v7x per-TC VMEM; most conservative generation
    return int(min(max(2 * need, 16 << 20), cap * 3 // 4))


# ---------------------------------------------------------------------------
# Forward wrapper
# ---------------------------------------------------------------------------
def ddpg_actor_forward(x, prep, *, max_block_b=256, out_dtype=jnp.float32):
    """x: [B, n_obs] f32.  prep: dict from prepare_params()."""
    n_obs, d1, d2, n_act, d1_p, d2_p, n_act_p = prep["dims"]
    B = x.shape[0]
    assert x.shape[1] == n_obs

    # Batch tiling: >= 2 grid steps whenever B > 8 so the "parallel" batch axis
    # can shard across the two TensorCores on v7x (harmless on v5e/v6e).
    n_tiles = max(_cdiv(B, max_block_b), 2 if B > SUBLANE else 1)
    tb = _round_up(_cdiv(B, n_tiles), SUBLANE)
    b_pad = n_tiles * tb

    x_in = x if b_pad == B else jnp.pad(x, ((0, b_pad - B), (0, 0)))

    args = (x_in, prep["w1"], prep["p1"], prep["w2"], prep["p2"],
            prep["wv"], prep["bv"])

    resident = pl.Buffered(1)   # constant index_map -> single VMEM copy

    def full_spec(a):
        nd = a.ndim
        return pl.BlockSpec(a.shape, lambda i, _nd=nd: (0,) * _nd,
                            pipeline_mode=resident)

    in_specs = [pl.BlockSpec((tb, n_obs), lambda i: (i, 0))]
    in_specs += [full_spec(a) for a in args[1:]]
    out_spec = pl.BlockSpec((tb, n_act_p), lambda i: (i, 0))

    out_itemsize = jnp.dtype(out_dtype).itemsize
    flops = 2 * b_pad * (n_obs * d1_p + d1_p * d2_p + d2_p * n_act_p)
    transcendentals = b_pad * (n_act + 2)   # tanh on real lanes + 2 rsqrt / row
    bytes_accessed = (b_pad * n_obs * 4
                      + sum(int(a.size) * a.dtype.itemsize for a in args[1:])
                      + b_pad * n_act_p * out_itemsize)

    kernel = functools.partial(ddpg_actor_kernel, d1=d1, d2=d2)

    out_p = pl.pallas_call(
        kernel,
        out_shape=jax.ShapeDtypeStruct((b_pad, n_act_p), out_dtype),
        grid=(n_tiles,),
        in_specs=in_specs,
        out_specs=out_spec,
        compiler_params=pltpu.CompilerParams(
            dimension_semantics=("parallel",),
            vmem_limit_bytes=_vmem_limit_bytes(
                args[1:], tb, n_obs, n_act_p, d1_p, d2_p, out_itemsize),
        ),
        cost_estimate=pl.CostEstimate(
            flops=flops,
            transcendentals=transcendentals,
            bytes_accessed=bytes_accessed,
        ),
    )(*args)

    # Slice padded batch rows / lanes back off outside the kernel.
    # TODO(synk): on v7x with huge B and tiny n_act, pass out_dtype=bf16 or
    #             fuse this slice into the consumer to halve HBM write traffic.
    return out_p[:B, :n_act]


# ---------------------------------------------------------------------------
# Init + reference (match PyTorch DDPGActorNet semantics)
# ---------------------------------------------------------------------------
def init_params(key, n_obs, fc_dims, n_act):
    """Hidden Linear: uniform(-f, f), f = 1/sqrt(out_features) (PyTorch code
    uses weight.size()[0] = out_features).  Output Linear: uniform(-0.003,
    0.003).  LayerNorm: gamma=1, beta=0.  Weights stored [in, out]."""
    d1, d2 = fc_dims
    ks = jax.random.split(key, 6)
    f1 = 1.0 / jnp.sqrt(jnp.float32(d1))
    f2 = 1.0 / jnp.sqrt(jnp.float32(d2))
    f3 = 0.003
    return {
        "w1": jax.random.uniform(ks[0], (n_obs, d1), jnp.float32, -f1, f1),
        "b1": jax.random.uniform(ks[1], (1, d1), jnp.float32, -f1, f1),
        "g1": jnp.ones((1, d1), jnp.float32),
        "be1": jnp.zeros((1, d1), jnp.float32),
        "w2": jax.random.uniform(ks[2], (d1, d2), jnp.float32, -f2, f2),
        "b2": jax.random.uniform(ks[3], (1, d2), jnp.float32, -f2, f2),
        "g2": jnp.ones((1, d2), jnp.float32),
        "be2": jnp.zeros((1, d2), jnp.float32),
        "wv": jax.random.uniform(ks[4], (d2, n_act), jnp.float32, -f3, f3),
        "bv": jax.random.uniform(ks[5], (1, n_act), jnp.float32, -f3, f3),
    }


def reference_forward(x, p):
    def ln(h, g, b):
        mu = jnp.mean(h, axis=-1, keepdims=True)
        var = jnp.mean((h - mu) ** 2, axis=-1, keepdims=True)
        return (h - mu) * jax.lax.rsqrt(var + LN_EPS) * g + b

    h = jnp.maximum(ln(x @ p["w1"] + p["b1"], p["g1"], p["be1"]), 0.0)
    h = jnp.maximum(ln(h @ p["w2"] + p["b2"], p["g2"], p["be2"]), 0.0)
    return jnp.tanh(h @ p["wv"] + p["bv"])


if __name__ == "__main__":
    B, N_OBS, FC_DIMS, N_ACT = 2, 8, [32, 32], 4

    key = jax.random.PRNGKey(0)
    k_params, k_x = jax.random.split(key)
    params = init_params(k_params, N_OBS, FC_DIMS, N_ACT)
    x = jax.random.normal(k_x, (B, N_OBS), jnp.float32)

    # Pad / cast / pack the parameters once; reuse `prep` for every forward.
    prep = prepare_params(params, n_obs=N_OBS, fc_dims=FC_DIMS, n_act=N_ACT)

    out = ddpg_actor_forward(x, prep)
    out = jax.block_until_ready(out)

    ref = reference_forward(x, params)
    assert out.shape == (B, N_ACT)
    # bf16 matmul operands vs f32 reference -> loosened tolerance.
    max_err = float(jnp.max(jnp.abs(out - ref)))
    assert jnp.allclose(out, ref, atol=1e-2, rtol=1e-2), (
        f"mismatch vs reference (max abs err {max_err})")

    print("KERNEL_OK")
</pallas_src>

<mosaic_0001>
module attributes {stable_mosaic.version = 11 : i64} {
  func.func @ddpg_actor_kernel(%arg0: i32, %arg1: memref<8x8xf32, #tpu.memory_space<vmem>>, %arg2: memref<8x128xbf16, #tpu.memory_space<vmem>>, %arg3: memref<3x128xf32, #tpu.memory_space<vmem>>, %arg4: memref<128x128xbf16, #tpu.memory_space<vmem>>, %arg5: memref<3x128xf32, #tpu.memory_space<vmem>>, %arg6: memref<128x128xbf16, #tpu.memory_space<vmem>>, %arg7: memref<1x128xf32, #tpu.memory_space<vmem>>, %arg8: memref<8x128xf32, #tpu.memory_space<vmem>>) attributes {dimension_semantics = [#tpu.dimension_semantics<parallel>], iteration_bounds = array<i64: 1>, scalar_prefetch = 0 : i64, scratch_operands = 0 : i64, tpu.core_type = #tpu.core_type<tc>, window_params = [{transform_indices = @transform_0, window_bounds = array<i64: 8, 8>}, {pipeline_mode = #tpu.pipeline_mode<synchronous>, transform_indices = @transform_1, window_bounds = array<i64: 8, 128>}, {pipeline_mode = #tpu.pipeline_mode<synchronous>, transform_indices = @transform_2, window_bounds = array<i64: 3, 128>}, {pipeline_mode = #tpu.pipeline_mode<synchronous>, transform_indices = @transform_3, window_bounds = array<i64: 128, 128>}, {pipeline_mode = #tpu.pipeline_mode<synchronous>, transform_indices = @transform_4, window_bounds = array<i64: 3, 128>}, {pipeline_mode = #tpu.pipeline_mode<synchronous>, transform_indices = @transform_5, window_bounds = array<i64: 128, 128>}, {pipeline_mode = #tpu.pipeline_mode<synchronous>, transform_indices = @transform_6, window_bounds = array<i64: 1, 128>}, {transform_indices = @transform_7, window_bounds = array<i64: 8, 128>}]} {
    %c0 = arith.constant 0 : index
    %c0_0 = arith.constant 0 : index
    %0 = vector.load %arg3[%c0, %c0_0] : memref<3x128xf32, #tpu.memory_space<vmem>>, vector<1x128xf32>
    %c1 = arith.constant 1 : index
    %c0_1 = arith.constant 0 : index
    %1 = vector.load %arg3[%c1, %c0_1] : memref<3x128xf32, #tpu.memory_space<vmem>>, vector<1x128xf32>
    %c2 = arith.constant 2 : index
    %c0_2 = arith.constant 0 : index
    %2 = vector.load %arg3[%c2, %c0_2] : memref<3x128xf32, #tpu.memory_space<vmem>>, vector<1x128xf32>
    %c0_3 = arith.constant 0 : index
    %c0_4 = arith.constant 0 : index
    %3 = vector.load %arg5[%c0_3, %c0_4] : memref<3x128xf32, #tpu.memory_space<vmem>>, vector<1x128xf32>
    %c1_5 = arith.constant 1 : index
    %c0_6 = arith.constant 0 : index
    %4 = vector.load %arg5[%c1_5, %c0_6] : memref<3x128xf32, #tpu.memory_space<vmem>>, vector<1x128xf32>
    %c2_7 = arith.constant 2 : index
    %c0_8 = arith.constant 0 : index
    %5 = vector.load %arg5[%c2_7, %c0_8] : memref<3x128xf32, #tpu.memory_space<vmem>>, vector<1x128xf32>
    %c0_9 = arith.constant 0 : index
    %c0_10 = arith.constant 0 : index
    %6 = vector.load %arg7[%c0_9, %c0_10] : memref<1x128xf32, #tpu.memory_space<vmem>>, vector<1x128xf32>
    %c0_11 = arith.constant 0 : index
    %c0_12 = arith.constant 0 : index
    %7 = vector.load %arg1[%c0_11, %c0_12] : memref<8x8xf32, #tpu.memory_space<vmem>>, vector<8x8xf32>
    %8 = arith.truncf %7 : vector<8x8xf32> to vector<8x8xbf16>
    %c0_13 = arith.constant 0 : index
    %c0_14 = arith.constant 0 : index
    %9 = vector.load %arg2[%c0_13, %c0_14] : memref<8x128xbf16, #tpu.memory_space<vmem>>, vector<8x128xbf16>
    %cst = arith.constant dense<0.000000e+00> : vector<8x128xf32>
    %10 = tpu.matmul %8, %9, %cst {dimension_numbers = #tpu.dot_dimension_numbers<[1], [0], [0], [1], [0, 0, 1, 1], [], []>} : vector<8x8xbf16>, vector<8x128xbf16>, vector<8x128xf32> -> vector<8x128xf32>
    %11 = vector.broadcast %0 : vector<1x128xf32> to vector<8x128xf32>
    %12 = arith.addf %10, %11 : vector<8x128xf32>
    %cst_15 = arith.constant dense<0.000000e+00> : vector<8xf32>
    %13 = vector.multi_reduction <add>, %12, %cst_15 [1] : vector<8x128xf32> to vector<8xf32>
    %14 = vector.shape_cast %13 : vector<8xf32> to vector<8x1xf32>
    %cst_16 = arith.constant 3.125000e-02 : f32
    %15 = vector.broadcast %cst_16 : f32 to vector<8x1xf32>
    %16 = arith.mulf %14, %15 : vector<8x1xf32>
    %17 = arith.mulf %12, %12 : vector<8x128xf32>
    %cst_17 = arith.constant dense<0.000000e+00> : vector<8xf32>
    %18 = vector.multi_reduction <add>, %17, %cst_17 [1] : vector<8x128xf32> to vector<8xf32>
    %19 = vector.shape_cast %18 : vector<8xf32> to vector<8x1xf32>
    %cst_18 = arith.constant 3.125000e-02 : f32
    %20 = vector.broadcast %cst_18 : f32 to vector<8x1xf32>
    %21 = arith.mulf %19, %20 : vector<8x1xf32>
    %22 = arith.mulf %16, %16 : vector<8x1xf32>
    %23 = arith.subf %21, %22 : vector<8x1xf32>
    %24 = vector.broadcast %16 : vector<8x1xf32> to vector<8x128xf32>
    %25 = arith.subf %12, %24 : vector<8x128xf32>
    %cst_19 = arith.constant 9.99999974E-6 : f32
    %26 = vector.broadcast %cst_19 : f32 to vector<8x1xf32>
    %27 = arith.addf %23, %26 : vector<8x1xf32>
    %28 = math.rsqrt %27 : vector<8x1xf32>
    %29 = vector.broadcast %28 : vector<8x1xf32> to vector<8x128xf32>
    %30 = arith.mulf %25, %29 : vector<8x128xf32>
    %31 = vector.broadcast %1 : vector<1x128xf32> to vector<8x128xf32>
    %32 = arith.mulf %30, %31 : vector<8x128xf32>
    %33 = vector.broadcast %2 : vector<1x128xf32> to vector<8x128xf32>
    %34 = arith.addf %32, %33 : vector<8x128xf32>
    %cst_20 = arith.constant 0.000000e+00 : f32
    %35 = vector.broadcast %cst_20 : f32 to vector<8x128xf32>
    %36 = arith.maximumf %34, %35 : vector<8x128xf32>
    %37 = arith.truncf %36 : vector<8x128xf32> to vector<8x128xbf16>
    %c0_21 = arith.constant 0 : index
    %c0_22 = arith.constant 0 : index
    %38 = vector.load %arg4[%c0_21, %c0_22] : memref<128x128xbf16, #tpu.memory_space<vmem>>, vector<128x128xbf16>
    %cst_23 = arith.constant dense<0.000000e+00> : vector<8x128xf32>
    %39 = tpu.matmul %37, %38, %cst_23 {dimension_numbers = #tpu.dot_dimension_numbers<[1], [0], [0], [1], [0, 0, 1, 1], [], []>} : vector<8x128xbf16>, vector<128x128xbf16>, vector<8x128xf32> -> vector<8x128xf32>
    %40 = vector.broadcast %3 : vector<1x128xf32> to vector<8x128xf32>
    %41 = arith.addf %39, %40 : vector<8x128xf32>
    %cst_24 = arith.constant dense<0.000000e+00> : vector<8xf32>
    %42 = vector.multi_reduction <add>, %41, %cst_24 [1] : vector<8x128xf32> to vector<8xf32>
    %43 = vector.shape_cast %42 : vector<8xf32> to vector<8x1xf32>
    %cst_25 = arith.constant 3.125000e-02 : f32
    %44 = vector.broadcast %cst_25 : f32 to vector<8x1xf32>
    %45 = arith.mulf %43, %44 : vector<8x1xf32>
    %46 = arith.mulf %41, %41 : vector<8x128xf32>
    %cst_26 = arith.constant dense<0.000000e+00> : vector<8xf32>
    %47 = vector.multi_reduction <add>, %46, %cst_26 [1] : vector<8x128xf32> to vector<8xf32>
    %48 = vector.shape_cast %47 : vector<8xf32> to vector<8x1xf32>
    %cst_27 = arith.constant 3.125000e-02 : f32
    %49 = vector.broadcast %cst_27 : f32 to vector<8x1xf32>
    %50 = arith.mulf %48, %49 : vector<8x1xf32>
    %51 = arith.mulf %45, %45 : vector<8x1xf32>
    %52 = arith.subf %50, %51 : vector<8x1xf32>
    %53 = vector.broadcast %45 : vector<8x1xf32> to vector<8x128xf32>
    %54 = arith.subf %41, %53 : vector<8x128xf32>
    %cst_28 = arith.constant 9.99999974E-6 : f32
    %55 = vector.broadcast %cst_28 : f32 to vector<8x1xf32>
    %56 = arith.addf %52, %55 : vector<8x1xf32>
    %57 = math.rsqrt %56 : vector<8x1xf32>
    %58 = vector.broadcast %57 : vector<8x1xf32> to vector<8x128xf32>
    %59 = arith.mulf %54, %58 : vector<8x128xf32>
    %60 = vector.broadcast %4 : vector<1x128xf32> to vector<8x128xf32>
    %61 = arith.mulf %59, %60 : vector<8x128xf32>
    %62 = vector.broadcast %5 : vector<1x128xf32> to vector<8x128xf32>
    %63 = arith.addf %61, %62 : vector<8x128xf32>
    %cst_29 = arith.constant 0.000000e+00 : f32
    %64 = vector.broadcast %cst_29 : f32 to vector<8x128xf32>
    %65 = arith.maximumf %63, %64 : vector<8x128xf32>
    %66 = arith.truncf %65 : vector<8x128xf32> to vector<8x128xbf16>
    %c0_30 = arith.constant 0 : index
    %c0_31 = arith.constant 0 : index
    %67 = vector.load %arg6[%c0_30, %c0_31] : memref<128x128xbf16, #tpu.memory_space<vmem>>, vector<128x128xbf16>
    %cst_32 = arith.constant dense<0.000000e+00> : vector<8x128xf32>
    %68 = tpu.matmul %66, %67, %cst_32 {dimension_numbers = #tpu.dot_dimension_numbers<[1], [0], [0], [1], [0, 0, 1, 1], [], []>} : vector<8x128xbf16>, vector<128x128xbf16>, vector<8x128xf32> -> vector<8x128xf32>
    %69 = vector.broadcast %6 : vector<1x128xf32> to vector<8x128xf32>
    %70 = arith.addf %68, %69 : vector<8x128xf32>
    %71 = math.tanh %70 : vector<8x128xf32>
    %c0_33 = arith.constant 0 : index
    %c0_34 = arith.constant 0 : index
    %72 = vector.load %arg8[%c0_33, %c0_34] : memref<8x128xf32, #tpu.memory_space<vmem>>, vector<8x128xf32>
    tpu.vector_store %arg8[%c0_33, %c0_34], %71 {strides = array<i32>} : memref<8x128xf32, #tpu.memory_space<vmem>>, vector<8x128xf32>,
    return
  }
  func.func @transform_0(%arg0: i32) -> (i32, i32) {
    %c0_i32 = arith.constant 0 : i32
    %c0_i32_0 = arith.constant 0 : i32
    return %arg0, %c0_i32 : i32, i32
  }
  func.func @transform_1(%arg0: i32) -> (i32, i32) {
    %c0_i32 = arith.constant 0 : i32
    %c0_i32_0 = arith.constant 0 : i32
    %c0_i32_1 = arith.constant 0 : i32
    return %c0_i32, %c0_i32_0 : i32, i32
  }
  func.func @transform_2(%arg0: i32) -> (i32, i32) {
    %c0_i32 = arith.constant 0 : i32
    %c0_i32_0 = arith.constant 0 : i32
    %c0_i32_1 = arith.constant 0 : i32
    return %c0_i32, %c0_i32_0 : i32, i32
  }
  func.func @transform_3(%arg0: i32) -> (i32, i32) {
    %c0_i32 = arith.constant 0 : i32
    %c0_i32_0 = arith.constant 0 : i32
    %c0_i32_1 = arith.constant 0 : i32
    return %c0_i32, %c0_i32_0 : i32, i32
  }
  func.func @transform_4(%arg0: i32) -> (i32, i32) {
    %c0_i32 = arith.constant 0 : i32
    %c0_i32_0 = arith.constant 0 : i32
    %c0_i32_1 = arith.constant 0 : i32
    return %c0_i32, %c0_i32_0 : i32, i32
  }
  func.func @transform_5(%arg0: i32) -> (i32, i32) {
    %c0_i32 = arith.constant 0 : i32
    %c0_i32_0 = arith.constant 0 : i32
    %c0_i32_1 = arith.constant 0 : i32
    return %c0_i32, %c0_i32_0 : i32, i32
  }
  func.func @transform_6(%arg0: i32) -> (i32, i32) {
    %c0_i32 = arith.constant 0 : i32
    %c0_i32_0 = arith.constant 0 : i32
    %c0_i32_1 = arith.constant 0 : i32
    return %c0_i32, %c0_i32_0 : i32, i32
  }
  func.func @transform_7(%arg0: i32) -> (i32, i32) {
    %c0_i32 = arith.constant 0 : i32
    %c0_i32_0 = arith.constant 0 : i32
    return %arg0, %c0_i32 : i32, i32
  }
}

</mosaic_0001>

<llo_original>
// kernel: tpu_custom_call.1
$region0: #{tpu_custom_call.1}
  #allocation0 [shape = 'u32[]', space=smem, size = 0x4, offset = 0x4, fixed_abs, tag = 'smem constant byte address 0x4 - core index']
  #allocation1 [shape = 'u32[144,128]{1,0:T(1,128)}', space=vmem, size = 0x12000, scoped, tag = 'internal scratch']
  %s0 = inlined_call_operand.hbm [shape: f32[8,8], index: 0, kind: input, shape index: {}]
  %s1 = inlined_call_operand.hbm [shape: bf16[8,128], index: 1, kind: input, shape index: {}]
  %s2 = inlined_call_operand.hbm [shape: f32[3,128], index: 2, kind: input, shape index: {}]
  %s3 = inlined_call_operand.hbm [shape: bf16[128,128], index: 3, kind: input, shape index: {}]
  %s4 = inlined_call_operand.vmem [shape: f32[3,128], index: 4, kind: input, shape index: {}]
  %s5 = inlined_call_operand.hbm [shape: bf16[128,128], index: 5, kind: input, shape index: {}]
  %s6 = inlined_call_operand.vmem [shape: f32[1,128], index: 6, kind: input, shape index: {}]
  %s7 = inlined_call_operand.hbm [shape: f32[8,128], index: 7, kind: output, shape index: {}]
  %s8 = sld [smem:[#allocation0]]
  $region58: #{tpu_custom_call.1} parent=0
    _
  %s10 = ssub.s32 1, %s8
  %s11 = scalar_select 0, %s10, %s8
  $region1: #{tpu_custom_call.1} parent=0
    #allocation2 [shape = 'u8[4096]{0}', space=vmem, size = 0x1000, scoped, tag = 'input window, operand 0, single buffered']
    #allocation3 [shape = 's32[1]{0}', space=sflag, size = 0x4, scoped, tag = 'scoped memory for tpu_custom_call.1']
    #allocation4 [shape = 's32[1]{0}', space=sflag, size = 0x4, scoped, tag = 'scoped memory for tpu_custom_call.1']
    #allocation5 [shape = 'u8[2048]{0}', space=vmem, size = 0x800, scoped, tag = 'input window, operand 1, single buffered']
    #allocation6 [shape = 's32[1]{0}', space=sflag, size = 0x4, scoped, tag = 'scoped memory for tpu_custom_call.1']
    #allocation7 [shape = 'u8[2048]{0}', space=vmem, size = 0x800, scoped, tag = 'input window, operand 2, single buffered']
    #allocation8 [shape = 'u8[32768]{0}', space=vmem, size = 0x8000, scoped, tag = 'input window, operand 3, single buffered']
    #allocation9 [shape = 's32[1]{0}', space=sflag, size = 0x4, scoped, tag = 'scoped memory for tpu_custom_call.1']
    #allocation10 [shape = 'u8[32768]{0}', space=vmem, size = 0x8000, scoped, tag = 'input window, operand 5, single buffered']
    #allocation11 [shape = 'u8[4096]{0}', space=vmem, size = 0x1000, scoped, tag = 'output window, operand 0, single buffered']
    %12 = vsyncpa [#allocation3], 0
    %13 = vsyncpa [#allocation6], 0
    %14 = vsyncpa [#allocation9], 0
    %15 = vsyncpa [#allocation4], 0
    // Predicated region
    $region2: #{tpu_custom_call.1} parent=1 // pred_check
      _
    $region3: #{tpu_custom_call.1} parent=1 // pred_check_branch
      %17 = sbr.rel (0) target = $region5
    $region4: #{tpu_custom_call.1} parent=1 // pred_region
      %s19 = ssub.s32 128, 128
      %20 = vsyncadd [#allocation3], %s19
      %s22 = sshll.u32 [#allocation2], 4
      %s23 = int_to_ptr.vmem [resolvable:$true] %s22
      %25 = dma.hbm_to_vmem [thread:$0]  %s0, 128, %s23, [#allocation3]
    $region5: #{tpu_custom_call.1} parent=1 // pred_fallthru
      _
    // Predicated region
    $region6: #{tpu_custom_call.1} parent=1 // pred_check
      _
    $region7: #{tpu_custom_call.1} parent=1 // pred_check_branch
      %27 = sbr.rel (0) target = $region9
    $region8: #{tpu_custom_call.1} parent=1 // pred_region
      %s29 = ssub.s32 64, 64
      %30 = vsyncadd [#allocation6], %s29
      %s32 = sshll.u32 [#allocation5], 4
      %s33 = int_to_ptr.vmem [resolvable:$true] %s32
      %35 = dma.hbm_to_vmem [thread:$0]  %s1, 64, %s33, [#allocation6]
    $region9: #{tpu_custom_call.1} parent=1 // pred_fallthru
      _
    // Predicated region
    $region10: #{tpu_custom_call.1} parent=1 // pred_check
      _
    $region11: #{tpu_custom_call.1} parent=1 // pred_check_branch
      %37 = sbr.rel (0) target = $region13
    $region12: #{tpu_custom_call.1} parent=1 // pred_region
      %s39 = ssub.s32 64, 64
      %40 = vsyncadd [#allocation6], %s39
      %s42 = sshll.u32 [#allocation7], 4
      %s43 = int_to_ptr.vmem [resolvable:$true] %s42
      %45 = dma.hbm_to_vmem [thread:$0]  %s2, 64, %s43, [#allocation6]
    $region13: #{tpu_custom_call.1} parent=1 // pred_fallthru
      _
    // Predicated region
    $region14: #{tpu_custom_call.1} parent=1 // pred_check
      _
    $region15: #{tpu_custom_call.1} parent=1 // pred_check_branch
      %47 = sbr.rel (0) target = $region17
    $region16: #{tpu_custom_call.1} parent=1 // pred_region
      %s49 = ssub.s32 1024, 1024
      %50 = vsyncadd [#allocation9], %s49
      %s51 = sshll.u32 [#allocation8], 4
      %s52 = int_to_ptr.vmem [resolvable:$true] %s51
      %57 = dma.hbm_to_vmem [thread:$0]  %s3, 1024, %s52, [#allocation9], 64, 64, 4
    $region17: #{tpu_custom_call.1} parent=1 // pred_fallthru
      _
    // Predicated region
    $region18: #{tpu_custom_call.1} parent=1 // pred_check
      _
    $region19: #{tpu_custom_call.1} parent=1 // pred_check_branch
      %59 = sbr.rel (0) target = $region21
    $region20: #{tpu_custom_call.1} parent=1 // pred_region
      _
    $region21: #{tpu_custom_call.1} parent=1 // pred_fallthru
      _
    // Predicated region
    $region22: #{tpu_custom_call.1} parent=1 // pred_check
      _
    $region23: #{tpu_custom_call.1} parent=1 // pred_check_branch
      %61 = sbr.rel (0) target = $region25
    $region24: #{tpu_custom_call.1} parent=1 // pred_region
      %s63 = ssub.s32 1024, 1024
      %64 = vsyncadd [#allocation9], %s63
      %s65 = sshll.u32 [#allocation10], 4
      %s66 = int_to_ptr.vmem [resolvable:$true] %s65
      %71 = dma.hbm_to_vmem [thread:$0]  %s5, 1024, %s66, [#allocation9], 64, 64, 4
    $region25: #{tpu_custom_call.1} parent=1 // pred_fallthru
      _
    // Predicated region
    $region26: #{tpu_custom_call.1} parent=1 // pred_check
      _
    $region27: #{tpu_custom_call.1} parent=1 // pred_check_branch
      %73 = sbr.rel (0) target = $region29
    $region28: #{tpu_custom_call.1} parent=1 // pred_region
      _
    $region29: #{tpu_custom_call.1} parent=1 // pred_fallthru
      _
    // Predicated region
    $region30: #{tpu_custom_call.1} parent=1 // pred_check
      _
    $region31: #{tpu_custom_call.1} parent=1 // pred_check_branch
      %75 = sbr.rel (0) target = $region33
    $region32: #{tpu_custom_call.1} parent=1 // pred_region
      %76 = dma.done [#allocation3], 128
    $region33: #{tpu_custom_call.1} parent=1 // pred_fallthru
      _
    // Predicated region
    $region34: #{tpu_custom_call.1} parent=1 // pred_check
      _
    $region35: #{tpu_custom_call.1} parent=1 // pred_check_branch
      %78 = sbr.rel (0) target = $region37
    $region36: #{tpu_custom_call.1} parent=1 // pred_region
      %79 = dma.done [#allocation6], 64
    $region37: #{tpu_custom_call.1} parent=1 // pred_fallthru
      _
    // Predicated region
    $region38: #{tpu_custom_call.1} parent=1 // pred_check
      _
    $region39: #{tpu_custom_call.1} parent=1 // pred_check_branch
      %81 = sbr.rel (0) target = $region41
    $region40: #{tpu_custom_call.1} parent=1 // pred_region
      %82 = dma.done [#allocation6], 64
    $region41: #{tpu_custom_call.1} parent=1 // pred_fallthru
      _
    // Predicated region
    $region42: #{tpu_custom_call.1} parent=1 // pred_check
      _
    $region43: #{tpu_custom_call.1} parent=1 // pred_check_branch
      %84 = sbr.rel (0) target = $region45
    $region44: #{tpu_custom_call.1} parent=1 // pred_region
      %85 = dma.done [#allocation9], 1024
    $region45: #{tpu_custom_call.1} parent=1 // pred_fallthru
      _
    // Predicated region
    $region46: #{tpu_custom_call.1} parent=1 // pred_check
      _
    $region47: #{tpu_custom_call.1} parent=1 // pred_check_branch
      %87 = sbr.rel (0) target = $region49
    $region48: #{tpu_custom_call.1} parent=1 // pred_region
      %88 = dma.done [#allocation9], 1024
    $region49: #{tpu_custom_call.1} parent=1 // pred_fallthru
      _
    %v90 = vld [vmem:[#allocation7] sm:$0x1]
    %v91 = vld [vmem:[#allocation7 + $0x1] sm:$0x1]
    %v92 = vld [vmem:[#allocation7 + $0x2] sm:$0x1]
    %v93 = vld [vmem:[%s4] sm:$0x1]
    %v94 = vld [vmem:[%s4 + $0x1] sm:$0x1]
    %v95 = vld [vmem:[%s4 + $0x2] sm:$0x1]
    %v96 = vld [vmem:[%s6] sm:$0x1]
    %v97 = vld [vmem:[#allocation2] sm:$0xff]
    %v98 = vpack.c.bf16 %v97, %v97
    %v99 = vld [vmem:[#allocation5] sm:$0xf]
    %v100 = vlaneseq
    %v101 = vshrl.u32 %v100, 7
    %v102 = vsub.s32 0, %v101
    %v103 = vrot.slane %v90, %v102
    %vm104 = vcmask 64512
    %v106 = vsel %vm104, %v98, 0
    %vm108 = vcmask 1043456
    %v110 = vsel %vm108, %v99, 0
    %112 = vmatprep.subr.bf16.mxu0 0
    %113 = vmatpush1.bf16.msra.mxu0 0
    %114 = vmatprep.subr.bf16.mxu0 0
    %115 = vmatpush1.bf16.msra.mxu0 0
    %116 = vmatprep.subr.bf16.mxu0 0
    %117 = vmatpush1.bf16.msra.mxu0 0
    %118 = vmatprep.subr.bf16.mxu0 0
    %119 = vmatpush1.bf16.msra.mxu0 0
    %120 = vmatprep.subr.bf16.mxu0 0
    %121 = vmatpush1.bf16.msra.mxu0 0
    %122 = vmatprep.subr.bf16.mxu0 0
    %123 = vmatpush1.bf16.msra.mxu0 0
    %124 = vmatprep.subr.bf16.mxu0 0
    %125 = vmatpush1.bf16.msra.mxu0 0
    %126 = vmatprep.subr.bf16.mxu0 0
    %127 = vmatpush1.bf16.msra.mxu0 %v110
    %128 = vmatprep.subr.bf16.mxu0 0
    %129 = vmatpush2.bf16.msra.mxu0 0
    %130 = vmatprep.subr.bf16.mxu0 0
    %131 = vmatpush2.bf16.msra.mxu0 0
    %132 = vmatprep.subr.bf16.mxu0 0
    %133 = vmatpush2.bf16.msra.mxu0 0
    %134 = vmatprep.subr.bf16.mxu0 0
    %135 = vmatpush2.bf16.msra.mxu0 0
    %136 = vmatprep.subr.bf16.mxu0 0
    %137 = vmatpush2.bf16.msra.mxu0 0
    %138 = vmatprep.subr.bf16.mxu0 0
    %139 = vmatpush2.bf16.msra.mxu0 0
    %140 = vmatprep.subr.bf16.mxu0 0
    %141 = vmatpush2.bf16.msra.mxu0 0
    %142 = vmatprep.subr.bf16.mxu0 0
    %143 = vmatpush2.bf16.msra.mxu0 0
    %144 = vmatprep.mubr.bf16.mxu0 0
    %145 = vmatmul.mubr.bf16.gmra.mxu0 %v106
    %v146 = vpop.f32.mrf.mxu0
    %v147 = vadd.f32 %v103, %v146
    %v148 = vpop.f32.mrf.mxu0
    %v149 = vpop.f32.mrf.mxu0
    %v150 = vpop.f32.mrf.mxu0
    %151 = vdwg.mxu0
    %152 = vadd.xlane.f32.xlu0 %v147
    %v153 = vpop.xlane.xlu0 %152
    %v154 = vmul.f32 %v153, 0.03125
    %v155 = vmul.f32 %v147, %v147
    %156 = vadd.xlane.f32.xlu0 %v155
    %v157 = vpop.xlane.xlu0 %156
    %v158 = vmul.f32 %v157, 0.03125
    %v159 = vmul.f32 %v154, %v154
    %v160 = vsub.f32 %v158, %v159
    %v161 = vsub.f32 %v147, %v154
    %v162 = vadd.f32 %v160, 1e-05
    %v163 = vrsqrt.pop %v162
    %v164 = vmul.f32 %v161, %v163
    %v165 = vlaneseq
    %v166 = vshrl.u32 %v165, 7
    %v167 = vsub.s32 0, %v166
    %v168 = vrot.slane %v91, %v167
    %v169 = vmul.f32 %v164, %v168
    %v170 = vlaneseq
    %v171 = vshrl.u32 %v170, 7
    %v172 = vsub.s32 0, %v171
    %v173 = vrot.slane %v92, %v172
    %v174 = vadd.f32 %v169, %v173
    %v175 = vmax.f32 %v174, 0.0
    %v176 = vpack.c.bf16 %v175, %v175
    %v177 = vld [vmem:[#allocation8] sm:$0xf]
    %v178 = vld [vmem:[#allocation8 + $0x4] sm:$0xf]
    %v179 = vld [vmem:[#allocation8 + $0x8] sm:$0xf]
    %v180 = vld [vmem:[#allocation8 + $0xc] sm:$0xf]
    %v181 = vld [vmem:[#allocation8 + $0x10] sm:$0xf]
    %v182 = vld [vmem:[#allocation8 + $0x14] sm:$0xf]
    %v183 = vld [vmem:[#allocation8 + $0x18] sm:$0xf]
    %v184 = vld [vmem:[#allocation8 + $0x1c] sm:$0xf]
    %v185 = vld [vmem:[#allocation8 + $0x20] sm:$0xf]
    %v186 = vld [vmem:[#allocation8 + $0x24] sm:$0xf]
    %v187 = vld [vmem:[#allocation8 + $0x28] sm:$0xf]
    %v188 = vld [vmem:[#allocation8 + $0x2c] sm:$0xf]
    %v189 = vld [vmem:[#allocation8 + $0x30] sm:$0xf]
    %v190 = vld [vmem:[#allocation8 + $0x34] sm:$0xf]
    %v191 = vld [vmem:[#allocation8 + $0x38] sm:$0xf]
    %v192 = vld [vmem:[#allocation8 + $0x3c] sm:$0xf]
    %v193 = vlaneseq
    %v194 = vshrl.u32 %v193, 7
    %v195 = vsub.s32 0, %v194
    %v196 = vrot.slane %v93, %v195
    %v213 = vunpack.c.l.b16 %v177
    %v214 = vunpack.c.l.b16 %v178
    %v215 = vunpack.c.l.b16 %v179
    %v216 = vunpack.c.l.b16 %v180
    %v217 = vunpack.c.l.b16 %v181
    %v218 = vunpack.c.l.b16 %v182
    %v219 = vunpack.c.l.b16 %v183
    %v220 = vunpack.c.l.b16 %v184
    %v221 = vunpack.c.l.b16 %v185
    %v222 = vunpack.c.l.b16 %v186
    %v223 = vunpack.c.l.b16 %v187
    %v224 = vunpack.c.l.b16 %v188
    %v225 = vunpack.c.l.b16 %v189
    %v226 = vunpack.c.l.b16 %v190
    %v227 = vunpack.c.l.b16 %v191
    %v228 = vunpack.c.l.b16 %v192
    %v229 = vpack.c.b16 %v214, %v213
    %v230 = vpack.c.b16 %v216, %v215
    %v231 = vpack.c.b16 %v218, %v217
    %v232 = vpack.c.b16 %v220, %v219
    %v233 = vpack.c.b16 %v222, %v221
    %v234 = vpack.c.b16 %v224, %v223
    %v235 = vpack.c.b16 %v226, %v225
    %v236 = vpack.c.b16 %v228, %v227
    %245 = vmatprep.subr.bf16.mxu0 0
    %246 = vmatpush1.bf16.msra.mxu0 %v236
    %247 = vmatprep.subr.bf16.mxu0 0
    %248 = vmatpush1.bf16.msra.mxu0 %v235
    %249 = vmatprep.subr.bf16.mxu0 0
    %250 = vmatpush1.bf16.msra.mxu0 %v234
    %251 = vmatprep.subr.bf16.mxu0 0
    %252 = vmatpush1.bf16.msra.mxu0 %v233
    %253 = vmatprep.subr.bf16.mxu0 0
    %254 = vmatpush1.bf16.msra.mxu0 %v232
    %255 = vmatprep.subr.bf16.mxu0 0
    %256 = vmatpush1.bf16.msra.mxu0 %v231
    %257 = vmatprep.subr.bf16.mxu0 0
    %258 = vmatpush1.bf16.msra.mxu0 %v230
    %259 = vmatprep.subr.bf16.mxu0 0
    %260 = vmatpush1.bf16.msra.mxu0 %v229
    %261 = vmatprep.subr.bf16.mxu0 0
    %262 = vmatpush2.bf16.msra.mxu0 0
    %263 = vmatprep.subr.bf16.mxu0 0
    %264 = vmatpush2.bf16.msra.mxu0 0
    %265 = vmatprep.subr.bf16.mxu0 0
    %266 = vmatpush2.bf16.msra.mxu0 0
    %267 = vmatprep.subr.bf16.mxu0 0
    %268 = vmatpush2.bf16.msra.mxu0 0
    %269 = vmatprep.subr.bf16.mxu0 0
    %270 = vmatpush2.bf16.msra.mxu0 0
    %271 = vmatprep.subr.bf16.mxu0 0
    %272 = vmatpush2.bf16.msra.mxu0 0
    %273 = vmatprep.subr.bf16.mxu0 0
    %274 = vmatpush2.bf16.msra.mxu0 0
    %275 = vmatprep.subr.bf16.mxu0 0
    %276 = vmatpush2.bf16.msra.mxu0 0
    %277 = vmatprep.mubr.bf16.mxu0 0
    %278 = vmatmul.mubr.bf16.gmra.mxu0 %v176
    %v279 = vpop.f32.mrf.mxu0
    %v280 = vadd.f32 %v196, %v279
    %v281 = vpop.f32.mrf.mxu0
    %v282 = vpop.f32.mrf.mxu0
    %v283 = vpop.f32.mrf.mxu0
    %284 = vdwg.mxu0
    %285 = vadd.xlane.f32.xlu0 %v280
    %v286 = vpop.xlane.xlu0 %285
    %v287 = vmul.f32 %v286, 0.03125
    %v288 = vmul.f32 %v280, %v280
    %289 = vadd.xlane.f32.xlu0 %v288
    %v290 = vpop.xlane.xlu0 %289
    %v291 = vmul.f32 %v290, 0.03125
    %v292 = vmul.f32 %v287, %v287
    %v293 = vsub.f32 %v291, %v292
    %v294 = vsub.f32 %v280, %v287
    %v295 = vadd.f32 %v293, 1e-05
    %v296 = vrsqrt.pop %v295
    %v297 = vmul.f32 %v294, %v296
    %v298 = vlaneseq
    %v299 = vshrl.u32 %v298, 7
    %v300 = vsub.s32 0, %v299
    %v301 = vrot.slane %v94, %v300
    %v302 = vmul.f32 %v297, %v301
    %v303 = vlaneseq
    %v304 = vshrl.u32 %v303, 7
    %v305 = vsub.s32 0, %v304
    %v306 = vrot.slane %v95, %v305
    %v307 = vadd.f32 %v302, %v306
    %v308 = vmax.f32 %v307, 0.0
    %v309 = vpack.c.bf16 %v308, %v308
    %v310 = vld [vmem:[#allocation10] sm:$0xf]
    %v311 = vld [vmem:[#allocation10 + $0x4] sm:$0xf]
    %v312 = vld [vmem:[#allocation10 + $0x8] sm:$0xf]
    %v313 = vld [vmem:[#allocation10 + $0xc] sm:$0xf]
    %v314 = vld [vmem:[#allocation10 + $0x10] sm:$0xf]
    %v315 = vld [vmem:[#allocation10 + $0x14] sm:$0xf]
    %v316 = vld [vmem:[#allocation10 + $0x18] sm:$0xf]
    %v317 = vld [vmem:[#allocation10 + $0x1c] sm:$0xf]
    %v318 = vld [vmem:[#allocation10 + $0x20] sm:$0xf]
    %v319 = vld [vmem:[#allocation10 + $0x24] sm:$0xf]
    %v320 = vld [vmem:[#allocation10 + $0x28] sm:$0xf]
    %v321 = vld [vmem:[#allocation10 + $0x2c] sm:$0xf]
    %v322 = vld [vmem:[#allocation10 + $0x30] sm:$0xf]
    %v323 = vld [vmem:[#allocation10 + $0x34] sm:$0xf]
    %v324 = vld [vmem:[#allocation10 + $0x38] sm:$0xf]
    %v325 = vld [vmem:[#allocation10 + $0x3c] sm:$0xf]
    %v327 = vlaneseq
    %v328 = vshrl.u32 %v327, 7
    %v329 = vsub.s32 0, %v328
    %v330 = vrot.slane %v96, %v329
    %v348 = vunpack.c.l.b16 %v310
    %v349 = vunpack.c.l.b16 %v311
    %v350 = vunpack.c.l.b16 %v312
    %v351 = vunpack.c.l.b16 %v313
    %v352 = vunpack.c.l.b16 %v314
    %v353 = vunpack.c.l.b16 %v315
    %v354 = vunpack.c.l.b16 %v316
    %v355 = vunpack.c.l.b16 %v317
    %v356 = vunpack.c.l.b16 %v318
    %v357 = vunpack.c.l.b16 %v319
    %v358 = vunpack.c.l.b16 %v320
    %v359 = vunpack.c.l.b16 %v321
    %v360 = vunpack.c.l.b16 %v322
    %v361 = vunpack.c.l.b16 %v323
    %v362 = vunpack.c.l.b16 %v324
    %v363 = vunpack.c.l.b16 %v325
    %v364 = vpack.c.b16 %v349, %v348
    %v365 = vpack.c.b16 %v351, %v350
    %v366 = vpack.c.b16 %v353, %v352
    %v367 = vpack.c.b16 %v355, %v354
    %v368 = vpack.c.b16 %v357, %v356
    %v369 = vpack.c.b16 %v359, %v358
    %v370 = vpack.c.b16 %v361, %v360
    %v371 = vpack.c.b16 %v363, %v362
    %380 = vmatprep.subr.bf16.mxu0 0
    %381 = vmatpush1.bf16.msra.mxu0 %v371
    %382 = vmatprep.subr.bf16.mxu0 0
    %383 = vmatpush1.bf16.msra.mxu0 %v370
    %384 = vmatprep.subr.bf16.mxu0 0
    %385 = vmatpush1.bf16.msra.mxu0 %v369
    %386 = vmatprep.subr.bf16.mxu0 0
    %387 = vmatpush1.bf16.msra.mxu0 %v368
    %388 = vmatprep.subr.bf16.mxu0 0
    %389 = vmatpush1.bf16.msra.mxu0 %v367
    %390 = vmatprep.subr.bf16.mxu0 0
    %391 = vmatpush1.bf16.msra.mxu0 %v366
    %392 = vmatprep.subr.bf16.mxu0 0
    %393 = vmatpush1.bf16.msra.mxu0 %v365
    %394 = vmatprep.subr.bf16.mxu0 0
    %395 = vmatpush1.bf16.msra.mxu0 %v364
    %396 = vmatprep.subr.bf16.mxu0 0
    %397 = vmatpush2.bf16.msra.mxu0 0
    %398 = vmatprep.subr.bf16.mxu0 0
    %399 = vmatpush2.bf16.msra.mxu0 0
    %400 = vmatprep.subr.bf16.mxu0 0
    %401 = vmatpush2.bf16.msra.mxu0 0
    %402 = vmatprep.subr.bf16.mxu0 0
    %403 = vmatpush2.bf16.msra.mxu0 0
    %404 = vmatprep.subr.bf16.mxu0 0
    %405 = vmatpush2.bf16.msra.mxu0 0
    %406 = vmatprep.subr.bf16.mxu0 0
    %407 = vmatpush2.bf16.msra.mxu0 0
    %408 = vmatprep.subr.bf16.mxu0 0
    %409 = vmatpush2.bf16.msra.mxu0 0
    %410 = vmatprep.subr.bf16.mxu0 0
    %411 = vmatpush2.bf16.msra.mxu0 0
    %412 = vmatprep.mubr.bf16.mxu0 0
    %413 = vmatmul.mubr.bf16.gmra.mxu0 %v309
    %v414 = vpop.f32.mrf.mxu0
    %v415 = vadd.f32 %v330, %v414
    %v416 = vpop.f32.mrf.mxu0
    %v417 = vpop.f32.mrf.mxu0
    %v418 = vpop.f32.mrf.mxu0
    %419 = vdwg.mxu0
    %v420 = vtanh.pop %v415
    %421 = vst [vmem:[#allocation11] sm:$0xff] %v420
    // Predicated region
    $region50: #{tpu_custom_call.1} parent=1 // pred_check
      _
    $region51: #{tpu_custom_call.1} parent=1 // pred_check_branch
      %423 = sbr.rel (0) target = $region53
    $region52: #{tpu_custom_call.1} parent=1 // pred_region
      %s425 = ssub.s32 128, 128
      %426 = vsyncadd [#allocation4], %s425
      %s428 = sshll.u32 [#allocation11], 4
      %s429 = int_to_ptr.vmem [resolvable:$true] %s428
      %431 = dma.vmem_to_hbm [thread:$0]  %s429, 128, %s7, [#allocation4]
    $region53: #{tpu_custom_call.1} parent=1 // pred_fallthru
      _
    // Predicated region
    $region54: #{tpu_custom_call.1} parent=1 // pred_check
      _
    $region55: #{tpu_custom_call.1} parent=1 // pred_check_branch
      %433 = sbr.rel (0) target = $region57
    $region56: #{tpu_custom_call.1} parent=1 // pred_region
      %434 = dma.done [#allocation4], 128
    $region57: #{tpu_custom_call.1} parent=1 // pred_fallthru
      _
    %435 = vsyncpa [#allocation3], 1
    %436 = vsyncpa [#allocation6], 1
    %437 = vsyncpa [#allocation9], 1
    %438 = vsyncpa [#allocation4], 1

</llo_original>
